<compile_context>
chip_gen: v5e
topology: v5e:2x2
jax: 0.10.0
libtpu: 0.0.40
codegen_flags: <defaults>
</compile_context>

<pallas_src>
import math

import jax
import jax.numpy as jnp
import numpy as np
from jax.experimental import pallas as pl
from jax.experimental.pallas import tpu as pltpu

INV_SQRT2 = 1.0 / math.sqrt(2.0)


# ---------------------------------------------------------------------------
# Pallas kernel
# ---------------------------------------------------------------------------
def _haar_swt_level(x, d):
    """One Haar SWT level on a (H, W) tile with dilation d (periodic boundary).

    Returns (LL, LH, HL, HH). Uses XLU rolls (free slot vs. VPU) for the
    periodic 2-tap filtering.
    """
    H, W = x.shape
    s = INV_SQRT2
    # column (lane) filtering: neighbour at (j + d) mod W == roll by (W - d)
    xr = pltpu.roll(x, shift=W - d, axis=1)
    lo_w = (x + xr) * s
    hi_w = (x - xr) * s
    # row (sublane) filtering: neighbour at (i + d) mod H == roll by (H - d)
    lo_r = pltpu.roll(lo_w, shift=H - d, axis=0)
    hi_r = pltpu.roll(hi_w, shift=H - d, axis=0)
    ll = (lo_w + lo_r) * s
    lh = (lo_w - lo_r) * s
    hl = (hi_w + hi_r) * s
    hh = (hi_w - hi_r) * s
    return ll, lh, hl, hh


def close_form_kernel(alpha_ref, rho_ref, v_ref, xk_ref, out_ref):
    alpha = alpha_ref[0]
    rho = rho_ref[0]
    # alpha * v / (rho * Wx^2 + alpha) == v / ((rho/alpha) * Wx^2 + 1)
    r = rho / alpha

    g = pl.program_id(1)                          # 0 -> level-1 bands, 1 -> level-2
    x = xk_ref[0, 0].astype(jnp.float32)          # (H, W)

    def fused_update(band, c):
        # Read v, square band, divide (EUP reciprocal), store: nothing stays live.
        v_c = v_ref[0, c].astype(jnp.float32)
        denom = r * (band * band) + 1.0
        out_ref[0, c] = (v_c * pl.reciprocal(denom, approx=False)).astype(out_ref.dtype)

    # level 1 (dilation 1); LL1 is only needed to feed level 2.
    ll1, lh1, hl1, hh1 = _haar_swt_level(x, 1)

    @pl.when(g == 0)
    def _():
        fused_update(lh1, 0)
        fused_update(hl1, 1)
        fused_update(hh1, 2)

    @pl.when(g == 1)
    def _():
        _, lh2, hl2, hh2 = _haar_swt_level(ll1, 2)
        fused_update(lh2, 0)
        fused_update(hl2, 1)
        fused_update(hh2, 2)


# ---------------------------------------------------------------------------
# Wrapper
# ---------------------------------------------------------------------------
def close_form_pallas(v, xk, alpha, rho):
    """v: (B, 6, H, W), xk: (B, 1, H, W) -> (B, 6, H, W)."""
    B, C, H, W = v.shape
    assert C == 6 and xk.shape == (B, 1, H, W)

    alpha_arr = jnp.asarray([alpha], dtype=jnp.float32)
    rho_arr = jnp.asarray([rho], dtype=jnp.float32)

    return pl.pallas_call(
        close_form_kernel,
        out_shape=jax.ShapeDtypeStruct((B, 6, H, W), v.dtype),
        grid=(B, 2),
        in_specs=[
            pl.BlockSpec(memory_space=pltpu.MemorySpace.SMEM),      # alpha
            pl.BlockSpec(memory_space=pltpu.MemorySpace.SMEM),      # rho
            pl.BlockSpec((1, 3, H, W), lambda b, g: (b, g, 0, 0)),  # v (band group)
            pl.BlockSpec((1, 1, H, W), lambda b, g: (b, 0, 0, 0)),  # xk (reused)
        ],
        out_specs=pl.BlockSpec((1, 3, H, W), lambda b, g: (b, g, 0, 0)),
        compiler_params=pltpu.CompilerParams(
            dimension_semantics=("parallel", "parallel"),
            vmem_limit_bytes=48 * 1024 * 1024),
    )(alpha_arr, rho_arr, v, xk)


# ---------------------------------------------------------------------------
# Pure-JAX reference (ground truth for the chosen SWT convention)
# ---------------------------------------------------------------------------
def _haar_swt_level_ref(x, d):
    s = INV_SQRT2
    xr = jnp.roll(x, -d, axis=-1)
    lo_w = (x + xr) * s
    hi_w = (x - xr) * s
    lo_r = jnp.roll(lo_w, -d, axis=-2)
    hi_r = jnp.roll(hi_w, -d, axis=-2)
    return (lo_w + lo_r) * s, (lo_w - lo_r) * s, (hi_w + hi_r) * s, (hi_w - hi_r) * s


def close_form_ref(v, xk, alpha, rho):
    x = xk[:, 0]                                   # (B, H, W)
    ll1, lh1, hl1, hh1 = _haar_swt_level_ref(x, 1)
    _,   lh2, hl2, hh2 = _haar_swt_level_ref(ll1, 2)
    wx = jnp.stack([lh1, hl1, hh1, lh2, hl2, hh2], axis=1)   # (B, 6, H, W)
    wx2 = wx * wx
    return alpha * v / (rho * wx2 + alpha)


# ---------------------------------------------------------------------------
if __name__ == "__main__":
    # Module __init__: alpha = rho = 0.5 (deterministic parameter init).
    alpha = 0.5
    rho = 0.5

    B, H, W = 2, 16, 128
    key = jax.random.PRNGKey(0)
    kv, kx = jax.random.split(key)
    v = jax.random.normal(kv, (B, 6, H, W), dtype=jnp.float32)
    xk = jax.random.normal(kx, (B, 1, H, W), dtype=jnp.float32)

    out = close_form_pallas(v, xk, alpha, rho)
    out = jax.block_until_ready(out)

    ref = close_form_ref(v, xk, alpha, rho)
    np.testing.assert_allclose(np.asarray(out), np.asarray(ref),
                               rtol=1e-5, atol=1e-5)

    print("KERNEL_OK")
</pallas_src>

<mosaic_0001>
module attributes {stable_mosaic.version = 11 : i64} {
  func.func @close_form_kernel(%arg0: i32, %arg1: i32, %arg2: memref<1xf32, #tpu.memory_space<smem>>, %arg3: memref<1xf32, #tpu.memory_space<smem>>, %arg4: memref<1x3x16x128xf32, #tpu.memory_space<vmem>>, %arg5: memref<1x1x16x128xf32, #tpu.memory_space<vmem>>, %arg6: memref<1x3x16x128xf32, #tpu.memory_space<vmem>>) attributes {dimension_semantics = [#tpu.dimension_semantics<parallel>, #tpu.dimension_semantics<parallel>], iteration_bounds = array<i64: 2, 2>, scalar_prefetch = 0 : i64, scratch_operands = 0 : i64, tpu.core_type = #tpu.core_type<tc>, window_params = [{transform_indices = @transform_0, window_bounds = array<i64: 1>}, {transform_indices = @transform_1, window_bounds = array<i64: 1>}, {transform_indices = @transform_2, window_bounds = array<i64: 1, 3, 16, 128>}, {transform_indices = @transform_3, window_bounds = array<i64: 1, 1, 16, 128>}, {transform_indices = @transform_4, window_bounds = array<i64: 1, 3, 16, 128>}]} {
    %c0 = arith.constant 0 : index
    %0 = memref.load %arg2[%c0] : memref<1xf32, #tpu.memory_space<smem>>
    %c0_0 = arith.constant 0 : index
    %1 = memref.load %arg3[%c0_0] : memref<1xf32, #tpu.memory_space<smem>>
    %2 = arith.divf %1, %0 : f32
    %c0_1 = arith.constant 0 : index
    %c0_2 = arith.constant 0 : index
    %c0_3 = arith.constant 0 : index
    %c0_4 = arith.constant 0 : index
    %3 = vector.load %arg5[%c0_1, %c0_2, %c0_3, %c0_4] : memref<1x1x16x128xf32, #tpu.memory_space<vmem>>, vector<1x1x16x128xf32>
    %4 = vector.shape_cast %3 : vector<1x1x16x128xf32> to vector<16x128xf32>
    %c127_i32 = arith.constant 127 : i32
    %5 = tpu.dynamic_rotate %4 by %c127_i32 dim 1 : vector<16x128xf32>, i32 -> vector<16x128xf32>
    %6 = arith.addf %4, %5 : vector<16x128xf32>
    %cst = arith.constant 0.707106769 : f32
    %7 = vector.broadcast %cst : f32 to vector<16x128xf32>
    %8 = arith.mulf %6, %7 : vector<16x128xf32>
    %9 = arith.subf %4, %5 : vector<16x128xf32>
    %cst_5 = arith.constant 0.707106769 : f32
    %10 = vector.broadcast %cst_5 : f32 to vector<16x128xf32>
    %11 = arith.mulf %9, %10 : vector<16x128xf32>
    %c15_i32 = arith.constant 15 : i32
    %12 = tpu.dynamic_rotate %8 by %c15_i32 dim 0 : vector<16x128xf32>, i32 -> vector<16x128xf32>
    %c15_i32_6 = arith.constant 15 : i32
    %13 = tpu.dynamic_rotate %11 by %c15_i32_6 dim 0 : vector<16x128xf32>, i32 -> vector<16x128xf32>
    %14 = arith.addf %8, %12 : vector<16x128xf32>
    %cst_7 = arith.constant 0.707106769 : f32
    %15 = vector.broadcast %cst_7 : f32 to vector<16x128xf32>
    %16 = arith.mulf %14, %15 : vector<16x128xf32>
    %17 = arith.subf %8, %12 : vector<16x128xf32>
    %cst_8 = arith.constant 0.707106769 : f32
    %18 = vector.broadcast %cst_8 : f32 to vector<16x128xf32>
    %19 = arith.mulf %17, %18 : vector<16x128xf32>
    %20 = arith.addf %11, %13 : vector<16x128xf32>
    %cst_9 = arith.constant 0.707106769 : f32
    %21 = vector.broadcast %cst_9 : f32 to vector<16x128xf32>
    %22 = arith.mulf %20, %21 : vector<16x128xf32>
    %23 = arith.subf %11, %13 : vector<16x128xf32>
    %cst_10 = arith.constant 0.707106769 : f32
    %24 = vector.broadcast %cst_10 : f32 to vector<16x128xf32>
    %25 = arith.mulf %23, %24 : vector<16x128xf32>
    %c0_i32 = arith.constant 0 : i32
    %26 = arith.cmpi eq, %arg1, %c0_i32 : i32
    %27 = arith.extui %26 : i1 to i32
    %c0_i32_11 = arith.constant 0 : i32
    %28 = arith.cmpi ne, %27, %c0_i32_11 : i32
    scf.if %28 {
      %c0_13 = arith.constant 0 : index
      %c0_14 = arith.constant 0 : index
      %c0_15 = arith.constant 0 : index
      %c0_16 = arith.constant 0 : index
      %32 = vector.load %arg4[%c0_13, %c0_14, %c0_15, %c0_16] : memref<1x3x16x128xf32, #tpu.memory_space<vmem>>, vector<1x1x16x128xf32>
      %33 = vector.shape_cast %32 : vector<1x1x16x128xf32> to vector<16x128xf32>
      %34 = arith.mulf %19, %19 : vector<16x128xf32>
      %35 = vector.broadcast %2 : f32 to vector<16x128xf32>
      %36 = arith.mulf %35, %34 : vector<16x128xf32>
      %cst_17 = arith.constant 1.000000e+00 : f32
      %37 = vector.broadcast %cst_17 : f32 to vector<16x128xf32>
      %38 = arith.addf %36, %37 : vector<16x128xf32>
      %39 = tpu.reciprocal %38 : vector<16x128xf32> -> vector<16x128xf32>
      %40 = arith.mulf %33, %39 : vector<16x128xf32>
      %c0_18 = arith.constant 0 : index
      %c0_19 = arith.constant 0 : index
      %c0_20 = arith.constant 0 : index
      %c0_21 = arith.constant 0 : index
      %41 = vector.load %arg6[%c0_18, %c0_19, %c0_20, %c0_21] : memref<1x3x16x128xf32, #tpu.memory_space<vmem>>, vector<1x1x16x128xf32>
      %42 = vector.shape_cast %41 : vector<1x1x16x128xf32> to vector<16x128xf32>
      %43 = vector.shape_cast %40 : vector<16x128xf32> to vector<1x1x16x128xf32>
      tpu.vector_store %arg6[%c0_18, %c0_19, %c0_20, %c0_21], %43 {strides = array<i32>} : memref<1x3x16x128xf32, #tpu.memory_space<vmem>>, vector<1x1x16x128xf32>,
      %c0_22 = arith.constant 0 : index
      %c1 = arith.constant 1 : index
      %c0_23 = arith.constant 0 : index
      %c0_24 = arith.constant 0 : index
      %44 = vector.load %arg4[%c0_22, %c1, %c0_23, %c0_24] : memref<1x3x16x128xf32, #tpu.memory_space<vmem>>, vector<1x1x16x128xf32>
      %45 = vector.shape_cast %44 : vector<1x1x16x128xf32> to vector<16x128xf32>
      %46 = arith.mulf %22, %22 : vector<16x128xf32>
      %47 = vector.broadcast %2 : f32 to vector<16x128xf32>
      %48 = arith.mulf %47, %46 : vector<16x128xf32>
      %cst_25 = arith.constant 1.000000e+00 : f32
      %49 = vector.broadcast %cst_25 : f32 to vector<16x128xf32>
      %50 = arith.addf %48, %49 : vector<16x128xf32>
      %51 = tpu.reciprocal %50 : vector<16x128xf32> -> vector<16x128xf32>
      %52 = arith.mulf %45, %51 : vector<16x128xf32>
      %c0_26 = arith.constant 0 : index
      %c1_27 = arith.constant 1 : index
      %c0_28 = arith.constant 0 : index
      %c0_29 = arith.constant 0 : index
      %53 = vector.load %arg6[%c0_26, %c1_27, %c0_28, %c0_29] : memref<1x3x16x128xf32, #tpu.memory_space<vmem>>, vector<1x1x16x128xf32>
      %54 = vector.shape_cast %53 : vector<1x1x16x128xf32> to vector<16x128xf32>
      %55 = vector.shape_cast %52 : vector<16x128xf32> to vector<1x1x16x128xf32>
      tpu.vector_store %arg6[%c0_26, %c1_27, %c0_28, %c0_29], %55 {strides = array<i32>} : memref<1x3x16x128xf32, #tpu.memory_space<vmem>>, vector<1x1x16x128xf32>,
      %c0_30 = arith.constant 0 : index
      %c2 = arith.constant 2 : index
      %c0_31 = arith.constant 0 : index
      %c0_32 = arith.constant 0 : index
      %56 = vector.load %arg4[%c0_30, %c2, %c0_31, %c0_32] : memref<1x3x16x128xf32, #tpu.memory_space<vmem>>, vector<1x1x16x128xf32>
      %57 = vector.shape_cast %56 : vector<1x1x16x128xf32> to vector<16x128xf32>
      %58 = arith.mulf %25, %25 : vector<16x128xf32>
      %59 = vector.broadcast %2 : f32 to vector<16x128xf32>
      %60 = arith.mulf %59, %58 : vector<16x128xf32>
      %cst_33 = arith.constant 1.000000e+00 : f32
      %61 = vector.broadcast %cst_33 : f32 to vector<16x128xf32>
      %62 = arith.addf %60, %61 : vector<16x128xf32>
      %63 = tpu.reciprocal %62 : vector<16x128xf32> -> vector<16x128xf32>
      %64 = arith.mulf %57, %63 : vector<16x128xf32>
      %c0_34 = arith.constant 0 : index
      %c2_35 = arith.constant 2 : index
      %c0_36 = arith.constant 0 : index
      %c0_37 = arith.constant 0 : index
      %65 = vector.load %arg6[%c0_34, %c2_35, %c0_36, %c0_37] : memref<1x3x16x128xf32, #tpu.memory_space<vmem>>, vector<1x1x16x128xf32>
      %66 = vector.shape_cast %65 : vector<1x1x16x128xf32> to vector<16x128xf32>
      %67 = vector.shape_cast %64 : vector<16x128xf32> to vector<1x1x16x128xf32>
      tpu.vector_store %arg6[%c0_34, %c2_35, %c0_36, %c0_37], %67 {strides = array<i32>} : memref<1x3x16x128xf32, #tpu.memory_space<vmem>>, vector<1x1x16x128xf32>,
    } else {
    }
    %c1_i32 = arith.constant 1 : i32
    %29 = arith.cmpi eq, %arg1, %c1_i32 : i32
    %30 = arith.extui %29 : i1 to i32
    %c0_i32_12 = arith.constant 0 : i32
    %31 = arith.cmpi ne, %30, %c0_i32_12 : i32
    scf.if %31 {
      %c126_i32 = arith.constant 126 : i32
      %32 = tpu.dynamic_rotate %16 by %c126_i32 dim 1 : vector<16x128xf32>, i32 -> vector<16x128xf32>
      %33 = arith.addf %16, %32 : vector<16x128xf32>
      %cst_13 = arith.constant 0.707106769 : f32
      %34 = vector.broadcast %cst_13 : f32 to vector<16x128xf32>
      %35 = arith.mulf %33, %34 : vector<16x128xf32>
      %36 = arith.subf %16, %32 : vector<16x128xf32>
      %cst_14 = arith.constant 0.707106769 : f32
      %37 = vector.broadcast %cst_14 : f32 to vector<16x128xf32>
      %38 = arith.mulf %36, %37 : vector<16x128xf32>
      %c14_i32 = arith.constant 14 : i32
      %39 = tpu.dynamic_rotate %35 by %c14_i32 dim 0 : vector<16x128xf32>, i32 -> vector<16x128xf32>
      %c14_i32_15 = arith.constant 14 : i32
      %40 = tpu.dynamic_rotate %38 by %c14_i32_15 dim 0 : vector<16x128xf32>, i32 -> vector<16x128xf32>
      %41 = arith.subf %35, %39 : vector<16x128xf32>
      %cst_16 = arith.constant 0.707106769 : f32
      %42 = vector.broadcast %cst_16 : f32 to vector<16x128xf32>
      %43 = arith.mulf %41, %42 : vector<16x128xf32>
      %44 = arith.addf %38, %40 : vector<16x128xf32>
      %cst_17 = arith.constant 0.707106769 : f32
      %45 = vector.broadcast %cst_17 : f32 to vector<16x128xf32>
      %46 = arith.mulf %44, %45 : vector<16x128xf32>
      %47 = arith.subf %38, %40 : vector<16x128xf32>
      %cst_18 = arith.constant 0.707106769 : f32
      %48 = vector.broadcast %cst_18 : f32 to vector<16x128xf32>
      %49 = arith.mulf %47, %48 : vector<16x128xf32>
      %c0_19 = arith.constant 0 : index
      %c0_20 = arith.constant 0 : index
      %c0_21 = arith.constant 0 : index
      %c0_22 = arith.constant 0 : index
      %50 = vector.load %arg4[%c0_19, %c0_20, %c0_21, %c0_22] : memref<1x3x16x128xf32, #tpu.memory_space<vmem>>, vector<1x1x16x128xf32>
      %51 = vector.shape_cast %50 : vector<1x1x16x128xf32> to vector<16x128xf32>
      %52 = arith.mulf %43, %43 : vector<16x128xf32>
      %53 = vector.broadcast %2 : f32 to vector<16x128xf32>
      %54 = arith.mulf %53, %52 : vector<16x128xf32>
      %cst_23 = arith.constant 1.000000e+00 : f32
      %55 = vector.broadcast %cst_23 : f32 to vector<16x128xf32>
      %56 = arith.addf %54, %55 : vector<16x128xf32>
      %57 = tpu.reciprocal %56 : vector<16x128xf32> -> vector<16x128xf32>
      %58 = arith.mulf %51, %57 : vector<16x128xf32>
      %c0_24 = arith.constant 0 : index
      %c0_25 = arith.constant 0 : index
      %c0_26 = arith.constant 0 : index
      %c0_27 = arith.constant 0 : index
      %59 = vector.load %arg6[%c0_24, %c0_25, %c0_26, %c0_27] : memref<1x3x16x128xf32, #tpu.memory_space<vmem>>, vector<1x1x16x128xf32>
      %60 = vector.shape_cast %59 : vector<1x1x16x128xf32> to vector<16x128xf32>
      %61 = vector.shape_cast %58 : vector<16x128xf32> to vector<1x1x16x128xf32>
      tpu.vector_store %arg6[%c0_24, %c0_25, %c0_26, %c0_27], %61 {strides = array<i32>} : memref<1x3x16x128xf32, #tpu.memory_space<vmem>>, vector<1x1x16x128xf32>,
      %c0_28 = arith.constant 0 : index
      %c1 = arith.constant 1 : index
      %c0_29 = arith.constant 0 : index
      %c0_30 = arith.constant 0 : index
      %62 = vector.load %arg4[%c0_28, %c1, %c0_29, %c0_30] : memref<1x3x16x128xf32, #tpu.memory_space<vmem>>, vector<1x1x16x128xf32>
      %63 = vector.shape_cast %62 : vector<1x1x16x128xf32> to vector<16x128xf32>
      %64 = arith.mulf %46, %46 : vector<16x128xf32>
      %65 = vector.broadcast %2 : f32 to vector<16x128xf32>
      %66 = arith.mulf %65, %64 : vector<16x128xf32>
      %cst_31 = arith.constant 1.000000e+00 : f32
      %67 = vector.broadcast %cst_31 : f32 to vector<16x128xf32>
      %68 = arith.addf %66, %67 : vector<16x128xf32>
      %69 = tpu.reciprocal %68 : vector<16x128xf32> -> vector<16x128xf32>
      %70 = arith.mulf %63, %69 : vector<16x128xf32>
      %c0_32 = arith.constant 0 : index
      %c1_33 = arith.constant 1 : index
      %c0_34 = arith.constant 0 : index
      %c0_35 = arith.constant 0 : index
      %71 = vector.load %arg6[%c0_32, %c1_33, %c0_34, %c0_35] : memref<1x3x16x128xf32, #tpu.memory_space<vmem>>, vector<1x1x16x128xf32>
      %72 = vector.shape_cast %71 : vector<1x1x16x128xf32> to vector<16x128xf32>
      %73 = vector.shape_cast %70 : vector<16x128xf32> to vector<1x1x16x128xf32>
      tpu.vector_store %arg6[%c0_32, %c1_33, %c0_34, %c0_35], %73 {strides = array<i32>} : memref<1x3x16x128xf32, #tpu.memory_space<vmem>>, vector<1x1x16x128xf32>,
      %c0_36 = arith.constant 0 : index
      %c2 = arith.constant 2 : index
      %c0_37 = arith.constant 0 : index
      %c0_38 = arith.constant 0 : index
      %74 = vector.load %arg4[%c0_36, %c2, %c0_37, %c0_38] : memref<1x3x16x128xf32, #tpu.memory_space<vmem>>, vector<1x1x16x128xf32>
      %75 = vector.shape_cast %74 : vector<1x1x16x128xf32> to vector<16x128xf32>
      %76 = arith.mulf %49, %49 : vector<16x128xf32>
      %77 = vector.broadcast %2 : f32 to vector<16x128xf32>
      %78 = arith.mulf %77, %76 : vector<16x128xf32>
      %cst_39 = arith.constant 1.000000e+00 : f32
      %79 = vector.broadcast %cst_39 : f32 to vector<16x128xf32>
      %80 = arith.addf %78, %79 : vector<16x128xf32>
      %81 = tpu.reciprocal %80 : vector<16x128xf32> -> vector<16x128xf32>
      %82 = arith.mulf %75, %81 : vector<16x128xf32>
      %c0_40 = arith.constant 0 : index
      %c2_41 = arith.constant 2 : index
      %c0_42 = arith.constant 0 : index
      %c0_43 = arith.constant 0 : index
      %83 = vector.load %arg6[%c0_40, %c2_41, %c0_42, %c0_43] : memref<1x3x16x128xf32, #tpu.memory_space<vmem>>, vector<1x1x16x128xf32>
      %84 = vector.shape_cast %83 : vector<1x1x16x128xf32> to vector<16x128xf32>
      %85 = vector.shape_cast %82 : vector<16x128xf32> to vector<1x1x16x128xf32>
      tpu.vector_store %arg6[%c0_40, %c2_41, %c0_42, %c0_43], %85 {strides = array<i32>} : memref<1x3x16x128xf32, #tpu.memory_space<vmem>>, vector<1x1x16x128xf32>,
    } else {
    }
    return
  }
  func.func @transform_0(%arg0: i32, %arg1: i32) -> i32 {
    %c0_i32 = arith.constant 0 : i32
    %c0_i32_0 = arith.constant 0 : i32
    return %c0_i32 : i32
  }
  func.func @transform_1(%arg0: i32, %arg1: i32) -> i32 {
    %c0_i32 = arith.constant 0 : i32
    %c0_i32_0 = arith.constant 0 : i32
    return %c0_i32 : i32
  }
  func.func @transform_2(%arg0: i32, %arg1: i32) -> (i32, i32, i32, i32) {
    %c0_i32 = arith.constant 0 : i32
    %c0_i32_0 = arith.constant 0 : i32
    %c0_i32_1 = arith.constant 0 : i32
    return %arg0, %arg1, %c0_i32, %c0_i32_0 : i32, i32, i32, i32
  }
  func.func @transform_3(%arg0: i32, %arg1: i32) -> (i32, i32, i32, i32) {
    %c0_i32 = arith.constant 0 : i32
    %c0_i32_0 = arith.constant 0 : i32
    %c0_i32_1 = arith.constant 0 : i32
    %c0_i32_2 = arith.constant 0 : i32
    return %arg0, %c0_i32, %c0_i32_0, %c0_i32_1 : i32, i32, i32, i32
  }
  func.func @transform_4(%arg0: i32, %arg1: i32) -> (i32, i32, i32, i32) {
    %c0_i32 = arith.constant 0 : i32
    %c0_i32_0 = arith.constant 0 : i32
    %c0_i32_1 = arith.constant 0 : i32
    return %arg0, %arg1, %c0_i32, %c0_i32_0 : i32, i32, i32, i32
  }
}

</mosaic_0001>

<llo_original>
// kernel: tpu_custom_call.1
$region0: #{tpu_custom_call.1}
  #allocation0 [shape = 'u32[]', space=smem, size = 0x4, offset = 0x4, fixed_abs, tag = 'smem constant byte address 0x4 - core index']
  #allocation1 [shape = 'u32[72,128]{1,0:T(1,128)}', space=vmem, size = 0x9000, scoped, tag = 'internal scratch']
  #allocation2 [shape = 'f32[1]{0:T(128)S(6)}', space=smem, size = 0x200, scoped, tag = 'scoped memory for tpu_custom_call.1']
  #allocation3 [shape = 'f32[1]{0:T(128)S(6)}', space=smem, size = 0x200, scoped, tag = 'scoped memory for tpu_custom_call.1']
  %s0 = inlined_call_operand.<no memory space> [shape: f32[1], index: 0, kind: input, shape index: {}]
  %s1 = inlined_call_operand.<no memory space> [shape: f32[1], index: 1, kind: input, shape index: {}]
  %s2 = inlined_call_operand.hbm [shape: f32[2,6,16,128], index: 2, kind: input, shape index: {}]
  %s3 = inlined_call_operand.hbm [shape: f32[2,1,16,128], index: 3, kind: input, shape index: {}]
  %s4 = inlined_call_operand.hbm [shape: f32[2,6,16,128], index: 4, kind: output, shape index: {}]
  %s5 = sld [smem:[#allocation0]]
  $region65: #{tpu_custom_call.1} parent=0
    _
  %s7 = ssub.s32 1, %s5
  %s8 = scalar_select 0, %s7, %s5
  %9 = sst [smem:[#allocation2]] %s0
  %10 = sst [smem:[#allocation3]] %s1
  $region1: #{tpu_custom_call.1} parent=0
    #allocation4 [shape = 'u8[49152]{0}', space=vmem, size = 0xc000, scoped, tag = 'input window, operand 2']
    #allocation5 [shape = 's32[2]{0}', space=sflag, size = 0x8, scoped, tag = 'scoped memory for tpu_custom_call.1']
    #allocation6 [shape = 's32[2]{0}', space=sflag, size = 0x8, scoped, tag = 'scoped memory for tpu_custom_call.1']
    #allocation7 [shape = 'u8[16384]{0}', space=vmem, size = 0x4000, scoped, tag = 'input window, operand 3']
    #allocation8 [shape = 's32[2]{0}', space=sflag, size = 0x8, scoped, tag = 'scoped memory for tpu_custom_call.1']
    #allocation9 [shape = 'u8[49152]{0}', space=vmem, size = 0xc000, scoped, tag = 'output window, operand 0']
    %11 = vsyncpa [#allocation5], 0
    %s12 = scalar_lea.sflag [#allocation5], 1
    %13 = vsyncpa %s12, 0
    %14 = vsyncpa [#allocation8], 0
    %s15 = scalar_lea.sflag [#allocation8], 1
    %16 = vsyncpa %s15, 0
    %17 = vsyncpa [#allocation6], 0
    %s18 = scalar_lea.sflag [#allocation6], 1
    %19 = vsyncpa %s18, 0
    loop: start=0, step=1, limit=6
    $region2: #{tpu_custom_call.1} parent=1 // loop_pre_header
      _
    $region3: #{tpu_custom_call.1} parent=1 // loop_header
      %s21 = sphi 0, %s25
      %p22 = scmp.ge.s32.totalorder %s21, 6
      %s28 = sphi 0, %s40
      %s29 = sphi 0, %s36
      %s30 = sphi 0, %s28
      %s31 = sphi 0, %s29
      %s32 = sphi 0, %s30
      %s33 = sphi 0, %s31
      %s41 = sphi 0, %s41
      %s43 = sphi 0, %s41
      %s44 = sphi 0, %s43
      %s58 = sphi 0, %s44
      %s62 = sphi 0, %s62
      %s64 = sphi 0, %s62
      %s65 = sphi 0, %s64
      %s79 = sphi 0, %s65
      %s87 = sphi 0, %s89
      %s90 = sphi 0, %s87
      %s91 = sphi 0, %s90
      %s107 = sphi 0, %s91
      %s113 = sphi 0, %s115
      %s116 = sphi 0, %s113
      %s117 = sphi 0, %s116
      %s133 = sphi 0, %s117
      %s141 = sphi 0, %s143
      %s144 = sphi 0, %s141
      %s145 = sphi 0, %s144
      %s161 = sphi 0, %s145
    $region4: #{tpu_custom_call.1} parent=1 // loop_header_branch
      %24 = sbr.rel (%p22) target = $region8
    $region5: #{tpu_custom_call.1} parent=1 // loop_body
      %s26 = ssub.s32 %s21, 1
      %s27 = ssub.s32 %s21, 2
      %s34 = sadd.s32 1, %s29
      %p35 = scmp.ge.s32.totalorder %s34, 2
      %s36 = scalar_select %p35, 0, %s34
      %s37 = sadd.s32 1, %s28
      %s38 = scalar_select %p35, %s37, %s28
      %p39 = scmp.ge.s32.totalorder %s38, 2
      %s40 = scalar_select %p39, 0, %s38
      %s42 = sadd.s32 %s41, 1
      %p45 = scmp.eq.s32.totalorder %s21, 3
      %p46 = scmp.ne.s32.totalorder %s41, %s43
      %p47 = scmp.eq.s32.totalorder %s21, 0
      %p48 = por %p46, %p47
      %p49 = scmp.ne.s32.totalorder %s41, %s43
      %p50 = scmp.eq.s32.totalorder %s26, 3
      %p51 = por %p49, %p50
      %p52 = scmp.ne.s32.totalorder %s43, %s44
      %p53 = scmp.eq.s32.totalorder %s26, 0
      %p54 = por %p52, %p53
      %p55 = scmp.ne.s32.totalorder %s43, %s44
      %p56 = scmp.eq.s32.totalorder %s27, 3
      %p57 = por %p55, %p56
      %p59 = scmp.ne.s32.totalorder %s44, %s58
      %p60 = scmp.eq.s32.totalorder %s27, 0
      %p61 = por %p59, %p60
      %s63 = sadd.s32 %s62, 1
      %p66 = scmp.eq.s32.totalorder %s21, 3
      %p67 = scmp.ne.s32.totalorder %s62, %s64
      %p68 = scmp.eq.s32.totalorder %s21, 0
      %p69 = por %p67, %p68
      %p70 = scmp.ne.s32.totalorder %s62, %s64
      %p71 = scmp.eq.s32.totalorder %s26, 3
      %p72 = por %p70, %p71
      %p73 = scmp.ne.s32.totalorder %s64, %s65
      %p74 = scmp.eq.s32.totalorder %s26, 0
      %p75 = por %p73, %p74
      %p76 = scmp.ne.s32.totalorder %s64, %s65
      %p77 = scmp.eq.s32.totalorder %s27, 3
      %p78 = por %p76, %p77
      %p80 = scmp.ne.s32.totalorder %s65, %s79
      %p81 = scmp.eq.s32.totalorder %s27, 0
      %p82 = por %p80, %p81
      %s83 = ssub.s32 %s28, %s40
      %s84 = ssub.s32 %s29, %s36
      %s85 = sor.u32 %s83, %s84
      %p86 = scmp.eq.s32.totalorder %s85, 0
      %s88 = sadd.s32 %s87, 1
      %s89 = scalar_select %p86, %s87, %s88
      %p92 = pneg %p86
      %p93 = scmp.eq.s32.totalorder %s21, 3
      %p94 = por %p92, %p93
      %p95 = scmp.ne.s32.totalorder %s87, %s90
      %p96 = scmp.eq.s32.totalorder %s21, 0
      %p97 = por %p95, %p96
      %p98 = scmp.ne.s32.totalorder %s87, %s90
      %p99 = scmp.eq.s32.totalorder %s26, 3
      %p100 = por %p98, %p99
      %p101 = scmp.ne.s32.totalorder %s90, %s91
      %p102 = scmp.eq.s32.totalorder %s26, 0
      %p103 = por %p101, %p102
      %p104 = scmp.ne.s32.totalorder %s90, %s91
      %p105 = scmp.eq.s32.totalorder %s27, 3
      %p106 = por %p104, %p105
      %p108 = scmp.ne.s32.totalorder %s91, %s107
      %p109 = scmp.eq.s32.totalorder %s27, 0
      %p110 = por %p108, %p109
      %s111 = ssub.s32 %s28, %s40
      %p112 = scmp.eq.s32.totalorder %s111, 0
      %s114 = sadd.s32 %s113, 1
      %s115 = scalar_select %p112, %s113, %s114
      %p118 = pneg %p112
      %p119 = scmp.eq.s32.totalorder %s21, 3
      %p120 = por %p118, %p119
      %p121 = scmp.ne.s32.totalorder %s113, %s116
      %p122 = scmp.eq.s32.totalorder %s21, 0
      %p123 = por %p121, %p122
      %p124 = scmp.ne.s32.totalorder %s113, %s116
      %p125 = scmp.eq.s32.totalorder %s26, 3
      %p126 = por %p124, %p125
      %p127 = scmp.ne.s32.totalorder %s116, %s117
      %p128 = scmp.eq.s32.totalorder %s26, 0
      %p129 = por %p127, %p128
      %p130 = scmp.ne.s32.totalorder %s116, %s117
      %p131 = scmp.eq.s32.totalorder %s27, 3
      %p132 = por %p130, %p131
      %p134 = scmp.ne.s32.totalorder %s117, %s133
      %p135 = scmp.eq.s32.totalorder %s27, 0
      %p136 = por %p134, %p135
      %s137 = ssub.s32 %s28, %s40
      %s138 = ssub.s32 %s29, %s36
      %s139 = sor.u32 %s137, %s138
      %p140 = scmp.eq.s32.totalorder %s139, 0
      %s142 = sadd.s32 %s141, 1
      %s143 = scalar_select %p140, %s141, %s142
      %p146 = pneg %p140
      %p147 = scmp.eq.s32.totalorder %s21, 3
      %p148 = por %p146, %p147
      %p149 = scmp.ne.s32.totalorder %s141, %s144
      %p150 = scmp.eq.s32.totalorder %s21, 0
      %p151 = por %p149, %p150
      %p152 = scmp.ne.s32.totalorder %s141, %s144
      %p153 = scmp.eq.s32.totalorder %s26, 3
      %p154 = por %p152, %p153
      %p155 = scmp.ne.s32.totalorder %s144, %s145
      %p156 = scmp.eq.s32.totalorder %s26, 0
      %p157 = por %p155, %p156
      %p158 = scmp.ne.s32.totalorder %s144, %s145
      %p159 = scmp.eq.s32.totalorder %s27, 3
      %p160 = por %p158, %p159
      %p162 = scmp.ne.s32.totalorder %s145, %s161
      %p163 = scmp.eq.s32.totalorder %s27, 0
      %p164 = por %p162, %p163
      %p165 = scmp.le.s32.totalorder 1, %s21
      %p166 = scmp.lt.s32.totalorder %s21, 5
      %p167 = pnand %p165, %p166
      %p168 = pneg %p167
      // Predicated region
      $region9: #{tpu_custom_call.1} parent=5 // pred_check
        _
      $region10: #{tpu_custom_call.1} parent=5 // pred_check_branch
        %170 = sbr.rel (%p167) target = $region12
      $region11: #{tpu_custom_call.1} parent=5 // pred_region
        %s171 = ssub.s32 %s21, 1
        // Predicated region
        $region13: #{tpu_custom_call.1} parent=11 // pred_check
          %p172 = pneg %p54
        $region14: #{tpu_custom_call.1} parent=11 // pred_check_branch
          %174 = sbr.rel (%p172) target = $region16
        $region15: #{tpu_custom_call.1} parent=11 // pred_region
          _
        $region16: #{tpu_custom_call.1} parent=11 // pred_fallthru
          _
        // Predicated region
        $region17: #{tpu_custom_call.1} parent=11 // pred_check
          %p175 = pneg %p75
        $region18: #{tpu_custom_call.1} parent=11 // pred_check_branch
          %177 = sbr.rel (%p175) target = $region20
        $region19: #{tpu_custom_call.1} parent=11 // pred_region
          _
        $region20: #{tpu_custom_call.1} parent=11 // pred_fallthru
          _
      $region12: #{tpu_custom_call.1} parent=5 // pred_fallthru
        _
      %p178 = scmp.lt.s32.totalorder %s21, 4
      // Predicated region
      $region21: #{tpu_custom_call.1} parent=5 // pred_check
        %p179 = pneg %p178
      $region22: #{tpu_custom_call.1} parent=5 // pred_check_branch
        %181 = sbr.rel (%p179) target = $region24
      $region23: #{tpu_custom_call.1} parent=5 // pred_region
        // Predicated region
        $region25: #{tpu_custom_call.1} parent=23 // pred_check
          %p182 = pneg %p97
        $region26: #{tpu_custom_call.1} parent=23 // pred_check_branch
          %184 = sbr.rel (%p182) target = $region28
        $region27: #{tpu_custom_call.1} parent=23 // pred_region
          %s185 = sand.u32 %s87, 1
          %s186 = scalar_lea.sflag [#allocation5], %s185
          %s187 = sand.u32 %s87, 1
          %s188 = smul.addr %s187, 48
          %s189 = scalar_lea.vmem [#allocation4], %s188
          %s190 = smul.u32 3, %s29
          %192 = vsyncadd %s186, 0
          %s193 = smul.addr %s190, 2
          %s194 = smul.addr %s28, 12
          %s195 = sadd.s32 %s193, %s194
          %s196 = smul.addr %s195, 8
          %s197 = scalar_lea.hbm %s2, %s196
          %s198 = sshll.u32 %s197, 4
          %s199 = int_to_ptr.hbm [resolvable:$true] %s198
          %s200 = sshll.u32 %s189, 4
          %s201 = int_to_ptr.vmem [resolvable:$true] %s200
          %206 = dma.hbm_to_vmem [thread:$0]  %s199, 768, %s201, %s186, 128, 128, 8
        $region28: #{tpu_custom_call.1} parent=23 // pred_fallthru
          _
        // Predicated region
        $region29: #{tpu_custom_call.1} parent=23 // pred_check
          %p207 = pneg %p123
        $region30: #{tpu_custom_call.1} parent=23 // pred_check_branch
          %209 = sbr.rel (%p207) target = $region32
        $region31: #{tpu_custom_call.1} parent=23 // pred_region
          %s210 = sand.u32 %s113, 1
          %s211 = scalar_lea.sflag [#allocation8], %s210
          %s212 = sand.u32 %s113, 1
          %s213 = smul.addr %s212, 16
          %s214 = scalar_lea.vmem [#allocation7], %s213
          %216 = vsyncadd %s211, 0
          %s217 = smul.addr %s28, 2
          %s218 = smul.addr %s217, 8
          %s219 = scalar_lea.hbm %s3, %s218
          %s220 = sshll.u32 %s219, 4
          %s221 = int_to_ptr.hbm [resolvable:$true] %s220
          %s222 = sshll.u32 %s214, 4
          %s223 = int_to_ptr.vmem [resolvable:$true] %s222
          %228 = dma.hbm_to_vmem [thread:$0]  %s221, 256, %s223, %s211, 128, 128, 8
        $region32: #{tpu_custom_call.1} parent=23 // pred_fallthru
          _
      $region24: #{tpu_custom_call.1} parent=5 // pred_fallthru
        _
      %p229 = scmp.le.s32.totalorder 1, %s21
      %p230 = scmp.lt.s32.totalorder %s21, 5
      %p231 = pnand %p229, %p230
      %p232 = pneg %p231
      // Predicated region
      $region33: #{tpu_custom_call.1} parent=5 // pred_check
        _
      $region34: #{tpu_custom_call.1} parent=5 // pred_check_branch
        %234 = sbr.rel (%p231) target = $region36
      $region35: #{tpu_custom_call.1} parent=5 // pred_region
        %s235 = ssub.s32 %s21, 1
        %s236 = sand.u32 %s90, 1
        %s237 = scalar_lea.sflag [#allocation5], %s236
        %s238 = sand.u32 %s90, 1
        %s239 = smul.addr %s238, 48
        %s240 = scalar_lea.vmem [#allocation4], %s239
        // Predicated region
        $region37: #{tpu_custom_call.1} parent=35 // pred_check
          %p241 = pneg %p103
        $region38: #{tpu_custom_call.1} parent=35 // pred_check_branch
          %243 = sbr.rel (%p241) target = $region40
        $region39: #{tpu_custom_call.1} parent=35 // pred_region
          %245 = dma.done %s237, 768
        $region40: #{tpu_custom_call.1} parent=35 // pred_fallthru
          _
        %s246 = sand.u32 %s116, 1
        %s247 = scalar_lea.sflag [#allocation8], %s246
        %s248 = sand.u32 %s116, 1
        %s249 = smul.addr %s248, 16
        %s250 = scalar_lea.vmem [#allocation7], %s249
        // Predicated region
        $region41: #{tpu_custom_call.1} parent=35 // pred_check
          %p251 = pneg %p129
        $region42: #{tpu_custom_call.1} parent=35 // pred_check_branch
          %253 = sbr.rel (%p251) target = $region44
        $region43: #{tpu_custom_call.1} parent=35 // pred_region
          %255 = dma.done %s247, 256
        $region44: #{tpu_custom_call.1} parent=35 // pred_fallthru
          _
        %p256 = pneg %p54
        %p257 = pneg %p51
        %p258 = pneg %p75
        %p259 = pneg %p72
        %s260 = sand.u32 %s90, 1
        %s261 = scalar_lea.sflag [#allocation5], %s260
        %s262 = sand.u32 %s90, 1
        %s263 = smul.addr %s262, 48
        %s264 = scalar_lea.vmem [#allocation4], %s263
        %p265 = pneg %p103
        %p266 = pneg %p100
        %s267 = sand.u32 %s116, 1
        %s268 = scalar_lea.sflag [#allocation8], %s267
        %s269 = sand.u32 %s116, 1
        %s270 = smul.addr %s269, 16
        %s271 = scalar_lea.vmem [#allocation7], %s270
        %p272 = pneg %p129
        %p273 = pneg %p126
        %p274 = pneg %p157
        %p275 = pneg %p154
        %s276 = sand.u32 %s144, 1
        %s277 = scalar_lea.sflag [#allocation6], %s276
        %s278 = sand.u32 %s144, 1
        %s279 = smul.addr %s278, 48
        %s280 = scalar_lea.vmem [#allocation9], %s279
        %s281 = smul.u32 3, %s31
        %s282 = smul.u32 3, %s31
        %s283 = sld [smem:[#allocation2]]
        %s284 = sld [smem:[#allocation3]]
        %v285 = vstv %s283
        %v286 = vrcp.pop %v285
        %v287 = vmul.f32 %v285, %v286
        %v288 = vsub.f32 1.0, %v287
        %v289 = vmul.f32 %v286, %v288
        %v290 = vadd.f32 %v286, %v289
        %vm291 = vweird.f32 %v285
        %vm292 = vweird.f32 %v286
        %vm293 = vmor %vm291, %vm292
        %v294 = vsel %vm293, %v286, %v290
        %v295 = vand.u32 2147483647, %v285
        %vm296 = vcmp.eq.f32.partialorder %v295, 8.507059e+37
        %v297 = vand.u32 %v285, 2147483648
        %v298 = vor.u32 1.1754944e-38, %v297
        %v299 = vsel %vm296, %v298, %v294
        %s300 = vtos %v299
        %s301 = smul.f32 %s284, %s300
        %v302 = vld [vmem:[%s250] sm:$0xff]
        %v303 = vld [vmem:[%s250 + $0x8] sm:$0xff]
        %304 = vrot.lane.b32.xlu0 %v302, 127
        %v305 = vpop.permute.xlu0 %304
        %306 = vrot.lane.b32.xlu0 %v303, 127
        %v307 = vpop.permute.xlu0 %306
        %v308 = vadd.f32 %v302, %v305
        %v309 = vadd.f32 %v303, %v307
        %v310 = vmul.f32 %v308, 0.70710677
        %v311 = vmul.f32 %v309, 0.70710677
        %v312 = vsub.f32 %v302, %v305
        %v313 = vsub.f32 %v303, %v307
        %v314 = vmul.f32 %v312, 0.70710677
        %v315 = vmul.f32 %v313, 0.70710677
        %v316 = vrot.slane %v310, 1
        %v317 = vrot.slane %v311, 1
        %v318 = vlaneseq
        %v319 = vshrl.u32 %v318, 7
        %vm320 = vcmp.lt.s32.totalorder %v319, 7
        %v321 = vsel %vm320, %v316, %v317
        %v322 = vsel %vm320, %v317, %v316
        %v323 = vrot.slane %v314, 1
        %v324 = vrot.slane %v315, 1
        %v325 = vsel %vm320, %v323, %v324
        %v326 = vsel %vm320, %v324, %v323
        %v327 = vadd.f32 %v310, %v321
        %v328 = vadd.f32 %v311, %v322
        %v329 = vmul.f32 %v327, 0.70710677
        %v330 = vmul.f32 %v328, 0.70710677
        %v331 = vsub.f32 %v310, %v321
        %v332 = vsub.f32 %v311, %v322
        %v333 = vmul.f32 %v331, 0.70710677
        %v334 = vmul.f32 %v332, 0.70710677
        %v335 = vadd.f32 %v314, %v325
        %v336 = vadd.f32 %v315, %v326
        %v337 = vmul.f32 %v335, 0.70710677
        %v338 = vmul.f32 %v336, 0.70710677
        %v339 = vsub.f32 %v314, %v325
        %v340 = vsub.f32 %v315, %v326
        %v341 = vmul.f32 %v339, 0.70710677
        %v342 = vmul.f32 %v340, 0.70710677
        %p343 = scmp.eq.s32.totalorder %s31, 0
        // Predicated region
        $region45: #{tpu_custom_call.1} parent=35 // pred_check
          %p344 = pneg %p343
        $region46: #{tpu_custom_call.1} parent=35 // pred_check_branch
          %346 = sbr.rel (%p344) target = $region48
        $region47: #{tpu_custom_call.1} parent=35 // pred_region
          %v347 = vld [vmem:[%s240] sm:$0xff]
          %v348 = vld [vmem:[%s240 + $0x8] sm:$0xff]
          %v349 = vmul.f32 %v333, %v333
          %v350 = vmul.f32 %v334, %v334
          %v351 = vstv %s301
          %v352 = vmul.f32 %v351, %v349
          %v353 = vmul.f32 %v351, %v350
          %v354 = vadd.f32 %v352, 1.0
          %v355 = vadd.f32 %v353, 1.0
          %v356 = vrcp.pop %v354
          %v357 = vmul.f32 %v354, %v356
          %v358 = vsub.f32 1.0, %v357
          %v359 = vmul.f32 %v356, %v358
          %v360 = vadd.f32 %v356, %v359
          %vm361 = vweird.f32 %v354
          %vm362 = vweird.f32 %v356
          %vm363 = vmor %vm361, %vm362
          %v364 = vsel %vm363, %v356, %v360
          %v365 = vand.u32 2147483647, %v354
          %vm366 = vcmp.eq.f32.partialorder %v365, 8.507059e+37
          %v367 = vand.u32 %v354, 2147483648
          %v368 = vor.u32 1.1754944e-38, %v367
          %v369 = vsel %vm366, %v368, %v364
          %v370 = vrcp.pop %v355
          %v371 = vmul.f32 %v355, %v370
          %v372 = vsub.f32 1.0, %v371
          %v373 = vmul.f32 %v370, %v372
          %v374 = vadd.f32 %v370, %v373
          %vm375 = vweird.f32 %v355
          %vm376 = vweird.f32 %v370
          %vm377 = vmor %vm375, %vm376
          %v378 = vsel %vm377, %v370, %v374
          %v379 = vand.u32 2147483647, %v355
          %vm380 = vcmp.eq.f32.partialorder %v379, 8.507059e+37
          %v381 = vand.u32 %v355, 2147483648
          %v382 = vor.u32 1.1754944e-38, %v381
          %v383 = vsel %vm380, %v382, %v378
          %v384 = vmul.f32 %v347, %v369
          %v385 = vmul.f32 %v348, %v383
          %386 = vst [vmem:[%s280] sm:$0xff] %v384
          %387 = vst [vmem:[%s280 + $0x8] sm:$0xff] %v385
          %s388 = scalar_lea.vmem %s240, 16 [#allocation4]
          %v389 = vld [vmem:[%s388] sm:$0xff]
          %v390 = vld [vmem:[%s388 + $0x8] sm:$0xff]
          %v391 = vmul.f32 %v337, %v337
          %v392 = vmul.f32 %v338, %v338
          %v393 = vmul.f32 %v351, %v391
          %v394 = vmul.f32 %v351, %v392
          %v395 = vadd.f32 %v393, 1.0
          %v396 = vadd.f32 %v394, 1.0
          %v397 = vrcp.pop %v395
          %v398 = vmul.f32 %v395, %v397
          %v399 = vsub.f32 1.0, %v398
          %v400 = vmul.f32 %v397, %v399
          %v401 = vadd.f32 %v397, %v400
          %vm402 = vweird.f32 %v395
          %vm403 = vweird.f32 %v397
          %vm404 = vmor %vm402, %vm403
          %v405 = vsel %vm404, %v397, %v401
          %v406 = vand.u32 2147483647, %v395
          %vm407 = vcmp.eq.f32.partialorder %v406, 8.507059e+37
          %v408 = vand.u32 %v395, 2147483648
          %v409 = vor.u32 1.1754944e-38, %v408
          %v410 = vsel %vm407, %v409, %v405
          %v411 = vrcp.pop %v396
          %v412 = vmul.f32 %v396, %v411
          %v413 = vsub.f32 1.0, %v412
          %v414 = vmul.f32 %v411, %v413
          %v415 = vadd.f32 %v411, %v414
          %vm416 = vweird.f32 %v396
          %vm417 = vweird.f32 %v411
          %vm418 = vmor %vm416, %vm417
          %v419 = vsel %vm418, %v411, %v415
          %v420 = vand.u32 2147483647, %v396
          %vm421 = vcmp.eq.f32.partialorder %v420, 8.507059e+37
          %v422 = vand.u32 %v396, 2147483648
          %v423 = vor.u32 1.1754944e-38, %v422
          %v424 = vsel %vm421, %v423, %v419
          %v425 = vmul.f32 %v389, %v410
          %v426 = vmul.f32 %v390, %v424
          %s427 = scalar_lea.vmem %s280, 16 [#allocation9]
          %428 = vst [vmem:[%s427] sm:$0xff] %v425
          %429 = vst [vmem:[%s427 + $0x8] sm:$0xff] %v426
          %s430 = scalar_lea.vmem %s240, 32 [#allocation4]
          %v431 = vld [vmem:[%s430] sm:$0xff]
          %v432 = vld [vmem:[%s430 + $0x8] sm:$0xff]
          %v433 = vmul.f32 %v341, %v341
          %v434 = vmul.f32 %v342, %v342
          %v435 = vmul.f32 %v351, %v433
          %v436 = vmul.f32 %v351, %v434
          %v437 = vadd.f32 %v435, 1.0
          %v438 = vadd.f32 %v436, 1.0
          %v439 = vrcp.pop %v437
          %v440 = vmul.f32 %v437, %v439
          %v441 = vsub.f32 1.0, %v440
          %v442 = vmul.f32 %v439, %v441
          %v443 = vadd.f32 %v439, %v442
          %vm444 = vweird.f32 %v437
          %vm445 = vweird.f32 %v439
          %vm446 = vmor %vm444, %vm445
          %v447 = vsel %vm446, %v439, %v443
          %v448 = vand.u32 2147483647, %v437
          %vm449 = vcmp.eq.f32.partialorder %v448, 8.507059e+37
          %v450 = vand.u32 %v437, 2147483648
          %v451 = vor.u32 1.1754944e-38, %v450
          %v452 = vsel %vm449, %v451, %v447
          %v453 = vrcp.pop %v438
          %v454 = vmul.f32 %v438, %v453
          %v455 = vsub.f32 1.0, %v454
          %v456 = vmul.f32 %v453, %v455
          %v457 = vadd.f32 %v453, %v456
          %vm458 = vweird.f32 %v438
          %vm459 = vweird.f32 %v453
          %vm460 = vmor %vm458, %vm459
          %v461 = vsel %vm460, %v453, %v457
          %v462 = vand.u32 2147483647, %v438
          %vm463 = vcmp.eq.f32.partialorder %v462, 8.507059e+37
          %v464 = vand.u32 %v438, 2147483648
          %v465 = vor.u32 1.1754944e-38, %v464
          %v466 = vsel %vm463, %v465, %v461
          %v467 = vmul.f32 %v431, %v452
          %v468 = vmul.f32 %v432, %v466
          %s469 = scalar_lea.vmem %s280, 32 [#allocation9]
          %470 = vst [vmem:[%s469] sm:$0xff] %v467
          %471 = vst [vmem:[%s469 + $0x8] sm:$0xff] %v468
        $region48: #{tpu_custom_call.1} parent=35 // pred_fallthru
          _
        %p472 = scmp.eq.s32.totalorder %s31, 1
        // Predicated region
        $region49: #{tpu_custom_call.1} parent=35 // pred_check
          %p473 = pneg %p472
        $region50: #{tpu_custom_call.1} parent=35 // pred_check_branch
          %475 = sbr.rel (%p473) target = $region52
        $region51: #{tpu_custom_call.1} parent=35 // pred_region
          %476 = vrot.lane.b32.xlu0 %v329, 126
          %v477 = vpop.permute.xlu0 %476
          %478 = vrot.lane.b32.xlu0 %v330, 126
          %v479 = vpop.permute.xlu0 %478
          %v480 = vadd.f32 %v329, %v477
          %v481 = vadd.f32 %v330, %v479
          %v482 = vmul.f32 %v480, 0.70710677
          %v483 = vmul.f32 %v481, 0.70710677
          %v484 = vsub.f32 %v329, %v477
          %v485 = vsub.f32 %v330, %v479
          %v486 = vmul.f32 %v484, 0.70710677
          %v487 = vmul.f32 %v485, 0.70710677
          %v488 = vrot.slane %v482, 2
          %v489 = vrot.slane %v483, 2
          %vm490 = vcmp.lt.s32.totalorder %v319, 6
          %v491 = vsel %vm490, %v488, %v489
          %v492 = vsel %vm490, %v489, %v488
          %v493 = vrot.slane %v486, 2
          %v494 = vrot.slane %v487, 2
          %v495 = vsel %vm490, %v493, %v494
          %v496 = vsel %vm490, %v494, %v493
          %v497 = vsub.f32 %v482, %v491
          %v498 = vsub.f32 %v483, %v492
          %v499 = vmul.f32 %v497, 0.70710677
          %v500 = vmul.f32 %v498, 0.70710677
          %v501 = vadd.f32 %v486, %v495
          %v502 = vadd.f32 %v487, %v496
          %v503 = vmul.f32 %v501, 0.70710677
          %v504 = vmul.f32 %v502, 0.70710677
          %v505 = vsub.f32 %v486, %v495
          %v506 = vsub.f32 %v487, %v496
          %v507 = vmul.f32 %v505, 0.70710677
          %v508 = vmul.f32 %v506, 0.70710677
          %v509 = vld [vmem:[%s240] sm:$0xff]
          %v510 = vld [vmem:[%s240 + $0x8] sm:$0xff]
          %v511 = vmul.f32 %v499, %v499
          %v512 = vmul.f32 %v500, %v500
          %v513 = vstv %s301
          %v514 = vmul.f32 %v513, %v511
          %v515 = vmul.f32 %v513, %v512
          %v516 = vadd.f32 %v514, 1.0
          %v517 = vadd.f32 %v515, 1.0
          %v518 = vrcp.pop %v516
          %v519 = vmul.f32 %v516, %v518
          %v520 = vsub.f32 1.0, %v519
          %v521 = vmul.f32 %v518, %v520
          %v522 = vadd.f32 %v518, %v521
          %vm523 = vweird.f32 %v516
          %vm524 = vweird.f32 %v518
          %vm525 = vmor %vm523, %vm524
          %v526 = vsel %vm525, %v518, %v522
          %v527 = vand.u32 2147483647, %v516
          %vm528 = vcmp.eq.f32.partialorder %v527, 8.507059e+37
          %v529 = vand.u32 %v516, 2147483648
          %v530 = vor.u32 1.1754944e-38, %v529
          %v531 = vsel %vm528, %v530, %v526
          %v532 = vrcp.pop %v517
          %v533 = vmul.f32 %v517, %v532
          %v534 = vsub.f32 1.0, %v533
          %v535 = vmul.f32 %v532, %v534
          %v536 = vadd.f32 %v532, %v535
          %vm537 = vweird.f32 %v517
          %vm538 = vweird.f32 %v532
          %vm539 = vmor %vm537, %vm538
          %v540 = vsel %vm539, %v532, %v536
          %v541 = vand.u32 2147483647, %v517
          %vm542 = vcmp.eq.f32.partialorder %v541, 8.507059e+37
          %v543 = vand.u32 %v517, 2147483648
          %v544 = vor.u32 1.1754944e-38, %v543
          %v545 = vsel %vm542, %v544, %v540
          %v546 = vmul.f32 %v509, %v531
          %v547 = vmul.f32 %v510, %v545
          %548 = vst [vmem:[%s280] sm:$0xff] %v546
          %549 = vst [vmem:[%s280 + $0x8] sm:$0xff] %v547
          %s550 = scalar_lea.vmem %s240, 16 [#allocation4]
          %v551 = vld [vmem:[%s550] sm:$0xff]
          %v552 = vld [vmem:[%s550 + $0x8] sm:$0xff]
          %v553 = vmul.f32 %v503, %v503
          %v554 = vmul.f32 %v504, %v504
          %v555 = vmul.f32 %v513, %v553
          %v556 = vmul.f32 %v513, %v554
          %v557 = vadd.f32 %v555, 1.0
          %v558 = vadd.f32 %v556, 1.0
          %v559 = vrcp.pop %v557
          %v560 = vmul.f32 %v557, %v559
          %v561 = vsub.f32 1.0, %v560
          %v562 = vmul.f32 %v559, %v561
          %v563 = vadd.f32 %v559, %v562
          %vm564 = vweird.f32 %v557
          %vm565 = vweird.f32 %v559
          %vm566 = vmor %vm564, %vm565
          %v567 = vsel %vm566, %v559, %v563
          %v568 = vand.u32 2147483647, %v557
          %vm569 = vcmp.eq.f32.partialorder %v568, 8.507059e+37
          %v570 = vand.u32 %v557, 2147483648
          %v571 = vor.u32 1.1754944e-38, %v570
          %v572 = vsel %vm569, %v571, %v567
          %v573 = vrcp.pop %v558
          %v574 = vmul.f32 %v558, %v573
          %v575 = vsub.f32 1.0, %v574
          %v576 = vmul.f32 %v573, %v575
          %v577 = vadd.f32 %v573, %v576
          %vm578 = vweird.f32 %v558
          %vm579 = vweird.f32 %v573
          %vm580 = vmor %vm578, %vm579
          %v581 = vsel %vm580, %v573, %v577
          %v582 = vand.u32 2147483647, %v558
          %vm583 = vcmp.eq.f32.partialorder %v582, 8.507059e+37
          %v584 = vand.u32 %v558, 2147483648
          %v585 = vor.u32 1.1754944e-38, %v584
          %v586 = vsel %vm583, %v585, %v581
          %v587 = vmul.f32 %v551, %v572
          %v588 = vmul.f32 %v552, %v586
          %s589 = scalar_lea.vmem %s280, 16 [#allocation9]
          %590 = vst [vmem:[%s589] sm:$0xff] %v587
          %591 = vst [vmem:[%s589 + $0x8] sm:$0xff] %v588
          %s592 = scalar_lea.vmem %s240, 32 [#allocation4]
          %v593 = vld [vmem:[%s592] sm:$0xff]
          %v594 = vld [vmem:[%s592 + $0x8] sm:$0xff]
          %v595 = vmul.f32 %v507, %v507
          %v596 = vmul.f32 %v508, %v508
          %v597 = vmul.f32 %v513, %v595
          %v598 = vmul.f32 %v513, %v596
          %v599 = vadd.f32 %v597, 1.0
          %v600 = vadd.f32 %v598, 1.0
          %v601 = vrcp.pop %v599
          %v602 = vmul.f32 %v599, %v601
          %v603 = vsub.f32 1.0, %v602
          %v604 = vmul.f32 %v601, %v603
          %v605 = vadd.f32 %v601, %v604
          %vm606 = vweird.f32 %v599
          %vm607 = vweird.f32 %v601
          %vm608 = vmor %vm606, %vm607
          %v609 = vsel %vm608, %v601, %v605
          %v610 = vand.u32 2147483647, %v599
          %vm611 = vcmp.eq.f32.partialorder %v610, 8.507059e+37
          %v612 = vand.u32 %v599, 2147483648
          %v613 = vor.u32 1.1754944e-38, %v612
          %v614 = vsel %vm611, %v613, %v609
          %v615 = vrcp.pop %v600
          %v616 = vmul.f32 %v600, %v615
          %v617 = vsub.f32 1.0, %v616
          %v618 = vmul.f32 %v615, %v617
          %v619 = vadd.f32 %v615, %v618
          %vm620 = vweird.f32 %v600
          %vm621 = vweird.f32 %v615
          %vm622 = vmor %vm620, %vm621
          %v623 = vsel %vm622, %v615, %v619
          %v624 = vand.u32 2147483647, %v600
          %vm625 = vcmp.eq.f32.partialorder %v624, 8.507059e+37
          %v626 = vand.u32 %v600, 2147483648
          %v627 = vor.u32 1.1754944e-38, %v626
          %v628 = vsel %vm625, %v627, %v623
          %v629 = vmul.f32 %v593, %v614
          %v630 = vmul.f32 %v594, %v628
          %s631 = scalar_lea.vmem %s280, 32 [#allocation9]
          %632 = vst [vmem:[%s631] sm:$0xff] %v629
          %633 = vst [vmem:[%s631 + $0x8] sm:$0xff] %v630
        $region52: #{tpu_custom_call.1} parent=35 // pred_fallthru
          _
        %s634 = sand.u32 %s144, 1
        %s635 = scalar_lea.sflag [#allocation6], %s634
        %s636 = sand.u32 %s144, 1
        %s637 = smul.addr %s636, 48
        %s638 = scalar_lea.vmem [#allocation9], %s637
        // Predicated region
        $region53: #{tpu_custom_call.1} parent=35 // pred_check
          %p639 = pneg %p154
        $region54: #{tpu_custom_call.1} parent=35 // pred_check_branch
          %641 = sbr.rel (%p639) target = $region56
        $region55: #{tpu_custom_call.1} parent=35 // pred_region
          %s642 = smul.u32 3, %s31
          %644 = vsyncadd %s635, 0
          %s645 = smul.addr %s642, 2
          %s646 = smul.addr %s30, 12
          %s647 = sadd.s32 %s645, %s646
          %s648 = smul.addr %s647, 8
          %s649 = scalar_lea.hbm %s4, %s648
          %s650 = sshll.u32 %s638, 4
          %s651 = int_to_ptr.vmem [resolvable:$true] %s650
          %s652 = sshll.u32 %s649, 4
          %s653 = int_to_ptr.hbm [resolvable:$true] %s652
          %658 = dma.vmem_to_hbm [thread:$0]  %s651, 768, %s653, %s635, 128, 128, 8
        $region56: #{tpu_custom_call.1} parent=35 // pred_fallthru
          _
      $region36: #{tpu_custom_call.1} parent=5 // pred_fallthru
        _
      %p659 = scmp.le.s32.totalorder 2, %s21
      // Predicated region
      $region57: #{tpu_custom_call.1} parent=5 // pred_check
        %p660 = pneg %p659
      $region58: #{tpu_custom_call.1} parent=5 // pred_check_branch
        %662 = sbr.rel (%p660) target = $region60
      $region59: #{tpu_custom_call.1} parent=5 // pred_region
        %s663 = ssub.s32 %s21, 2
        // Predicated region
        $region61: #{tpu_custom_call.1} parent=59 // pred_check
          %p664 = pneg %p160
        $region62: #{tpu_custom_call.1} parent=59 // pred_check_branch
          %666 = sbr.rel (%p664) target = $region64
        $region63: #{tpu_custom_call.1} parent=59 // pred_region
          %s667 = sand.u32 %s145, 1
          %s668 = scalar_lea.sflag [#allocation6], %s667
          %s669 = sand.u32 %s145, 1
          %s670 = smul.addr %s669, 48
          %s671 = scalar_lea.vmem [#allocation9], %s670
          %673 = dma.done %s668, 768
        $region64: #{tpu_custom_call.1} parent=59 // pred_fallthru
          _
      $region60: #{tpu_custom_call.1} parent=5 // pred_fallthru
        _
    $region6: #{tpu_custom_call.1} parent=1 // loop_footer
      %s25 = sadd.s32 1, %s21
    $region7: #{tpu_custom_call.1} parent=1 // loop_footer_branch
      %20 = sbr.rel target = $region3
    $region8: #{tpu_custom_call.1} parent=1 // loop_exit
      _
    %674 = vsyncpa [#allocation5], 1
    %s675 = scalar_lea.sflag [#allocation5], 1
    %676 = vsyncpa %s675, 1
    %677 = vsyncpa [#allocation8], 1
    %s678 = scalar_lea.sflag [#allocation8], 1
    %679 = vsyncpa %s678, 1
    %680 = vsyncpa [#allocation6], 1
    %s681 = scalar_lea.sflag [#allocation6], 1
    %682 = vsyncpa %s681, 1

</llo_original>
